<compile_context>
chip_gen: v5e
topology: v5e:2x2
jax: 0.10.0
libtpu: 0.0.40
codegen_flags: <defaults>
</compile_context>

<pallas_src>
import functools

import jax
import jax.numpy as jnp
from jax.experimental import pallas as pl
from jax.experimental.pallas import tpu as pltpu

# ---------------- model hyper-parameters (match the PyTorch module) -------------
INPUT_DIM = 8
HIDDEN = 32
HEADS = 4
NEG_SLOPE = 0.2          # GATv2Conv default
LN_EPS = 1e-5            # torch.nn.LayerNorm default
NEG_BIG = -1e30          # softmax mask fill
NEG_MAX = -3e38          # max-pool mask fill


def _round_up(v, m):
    return (v + m - 1) // m * m


# ---------------- kernels ---------------------------------------------------------
def _proj_kernel(x_ref, w_ref, b_ref, z_ref):
    # Fused source/target projection: z = x @ [W_l | W_r] + [b_l | b_r]
    z_ref[...] = (jnp.dot(x_ref[...], w_ref[...], preferred_element_type=jnp.float32)
                  + b_ref[...])


def _gatv2_attn_kernel(z_src_ref, z_tgt_ref, adj_ref, att_ref, bias_ref,
                       gamma_ref, beta_ref, out_ref, hacc_ref, *, heads, out_ch):
    """One target-row tile of a dense-masked GATv2 layer, fused with LayerNorm + ELU."""
    hc = heads * out_ch
    z_src = z_src_ref[...]                      # [N, 2*HC]   all nodes (sources)
    xl_all = z_src[:, :hc]                      # [N, HC]     W_l x_j  (messages)
    xr_tile = z_tgt_ref[...][:, hc:]            # [TM, HC]    W_r x_i  (this row tile)
    adj = adj_ref[...]                          # [TM, N]     bf16 edge mask (row = target)
    att = att_ref[...]                          # [heads, C]
    mask = adj > 0                              # hoisted (loop-invariant)

    xl_t = xl_all.T                             # [HC, N]  one XLU transpose per tile

    for h in range(heads):
        base = h * out_ch
        xr_h = xr_tile[:, base:base + out_ch]   # [TM, C]
        # Lane-dense score accumulation over the channel dim:
        #   score[i, j] += att[h, c] * leaky_relu(xr[i, c] + xl[j, c])
        score = jnp.zeros(mask.shape, jnp.float32)                     # [TM, N]
        for c in range(out_ch):
            pair = xr_h[:, c:c + 1] + xl_t[base + c:base + c + 1, :]   # [TM, N]
            lrelu = jnp.where(pair > 0, pair, NEG_SLOPE * pair)
            score = score + att[h:h + 1, c:c + 1] * lrelu

        # masked softmax over source nodes j (per target row i)
        score = jnp.where(mask, score, NEG_BIG)
        score = score - jnp.max(score, axis=-1, keepdims=True)
        e = jnp.where(mask, jnp.exp(score), 0.0)
        denom = jnp.sum(e, axis=-1, keepdims=True)
        alpha = e * pl.reciprocal(denom, approx=True)                  # EUP, not VALU divide

        # aggregate source messages; write this head at its static lane offset
        hacc_ref[:, base:base + out_ch] = jnp.dot(
            alpha, xl_all[:, base:base + out_ch], preferred_element_type=jnp.float32)

    hidden = hacc_ref[...] + bias_ref[...]                             # [TM, HC]

    # LayerNorm over the feature dim
    mu = jnp.mean(hidden, axis=-1, keepdims=True)
    var = jnp.mean((hidden - mu) ** 2, axis=-1, keepdims=True)
    normed = (hidden - mu) * jax.lax.rsqrt(var + LN_EPS) * gamma_ref[...] + beta_ref[...]

    # ELU (min() keeps the discarded branch finite)
    out_ref[...] = jnp.where(normed > 0, normed,
                             jnp.exp(jnp.minimum(normed, 0.0)) - 1.0)


def _pool_lin_kernel(h_ref, pool_ref, poolt_ref, inv_cnt_ref, wlin_ref, blin_ref,
                     out_ref, *, num_graphs):
    h = h_ref[...]                                                     # [N, C]
    pool = pool_ref[...]                                               # [B, N]
    poolt = poolt_ref[...]                                             # [N, B]

    # global mean pool: multiply by precomputed reciprocal counts (no divide)
    x_mean = (jnp.dot(pool, h, preferred_element_type=jnp.float32)
              * inv_cnt_ref[...])                                      # [B, C]

    # global max pool: per-graph masked reduce (no [B, N, C] broadcast)
    rows = []
    for b in range(num_graphs):
        masked = jnp.where(poolt[:, b:b + 1] > 0, h, NEG_MAX)          # [N, C]
        rows.append(jnp.max(masked, axis=0, keepdims=True))            # [1, C]
    x_max = jnp.concatenate(rows, axis=0)                              # [B, C]

    feat = jnp.concatenate([x_mean, x_max], axis=-1)                   # [B, 2C]
    out_ref[...] = (jnp.dot(feat, wlin_ref[...], preferred_element_type=jnp.float32)
                    + blin_ref[...])                                   # [B, 1]


# ---------------- per-layer wrapper ------------------------------------------------
def _gatv2_layer(x_in, adj, w_lr, b_lr, att, bias, gamma, beta, *, heads, out_ch, tile_m):
    n_pad, f_in = x_in.shape
    hc = heads * out_ch
    grid_m = n_pad // tile_m
    par = pltpu.CompilerParams(dimension_semantics=("parallel",))      # megacore on v7x

    # (a) fused projection
    z = pl.pallas_call(
        _proj_kernel,
        out_shape=jax.ShapeDtypeStruct((n_pad, 2 * hc), jnp.float32),
        grid=(grid_m,),
        in_specs=[pl.BlockSpec((tile_m, f_in), lambda i: (i, 0)),
                  pl.BlockSpec((f_in, 2 * hc), lambda i: (0, 0)),
                  pl.BlockSpec((1, 2 * hc), lambda i: (0, 0))],
        out_specs=pl.BlockSpec((tile_m, 2 * hc), lambda i: (i, 0)),
        compiler_params=par,
    )(x_in, w_lr, b_lr)

    # (b) row-tiled attention + LayerNorm + ELU
    h = pl.pallas_call(
        functools.partial(_gatv2_attn_kernel, heads=heads, out_ch=out_ch),
        out_shape=jax.ShapeDtypeStruct((n_pad, hc), jnp.float32),
        grid=(grid_m,),
        in_specs=[pl.BlockSpec((n_pad, 2 * hc), lambda i: (0, 0)),     # z: all sources
                  pl.BlockSpec((tile_m, 2 * hc), lambda i: (i, 0)),    # z: target row tile
                  pl.BlockSpec((tile_m, n_pad), lambda i: (i, 0)),     # adj row tile (bf16)
                  pl.BlockSpec((heads, out_ch), lambda i: (0, 0)),     # att
                  pl.BlockSpec((1, hc), lambda i: (0, 0)),             # bias
                  pl.BlockSpec((1, hc), lambda i: (0, 0)),             # gamma
                  pl.BlockSpec((1, hc), lambda i: (0, 0))],            # beta
        out_specs=pl.BlockSpec((tile_m, hc), lambda i: (i, 0)),
        scratch_shapes=[pltpu.VMEM((tile_m, hc), jnp.float32)],
        compiler_params=par,
    )(z, z, adj, att, bias, gamma, beta)
    return h


# ---------------- full forward -----------------------------------------------------
def gat_classifier_forward(x, edge_index, batch, params, num_graphs, tile_m=16):
    """Eval-mode forward pass; returns [num_graphs] logits (matches x.view(-1))."""
    (wl1, bl1, wr1, br1, att1, bias1, g1, be1,
     wl2, bl2, wr2, br2, att2, bias2, g2, be2,
     wlin, blin) = params

    assert tile_m % 16 == 0, "tile_m must be a multiple of 16 (bf16 adj sublane tiling)"
    n = x.shape[0]
    n_pad = max(_round_up(n, tile_m), tile_m)

    # Padded node features; padded nodes carry zeros and only a self loop.
    x_pad = jnp.zeros((n_pad, x.shape[1]), jnp.float32).at[:n].set(x.astype(jnp.float32))

    # Dense adjacency mask (target row, source col), bf16 to halve DMA bytes / VMEM.
    src, dst = edge_index[0], edge_index[1]
    adj = jnp.zeros((n_pad, n_pad), jnp.float32).at[dst, src].set(1.0)
    adj = adj.at[jnp.arange(n_pad), jnp.arange(n_pad)].set(1.0)        # self loops
    adj = adj.astype(jnp.bfloat16)

    batch_pad = jnp.full((n_pad,), -1, jnp.int32).at[:n].set(batch.astype(jnp.int32))
    pool = (batch_pad[None, :] == jnp.arange(num_graphs)[:, None]).astype(jnp.float32)
    pool_t = pool.T
    inv_cnt = 1.0 / jnp.maximum(jnp.sum(pool, axis=1, keepdims=True), 1.0)

    # Fuse W_l / W_r into one matrix per conv (single MXU pass in the projection kernel).
    wlr1 = jnp.concatenate([wl1, wr1], axis=1)
    blr1 = jnp.concatenate([bl1, br1], axis=1)
    wlr2 = jnp.concatenate([wl2, wr2], axis=1)
    blr2 = jnp.concatenate([bl2, br2], axis=1)

    h1 = _gatv2_layer(x_pad, adj, wlr1, blr1, att1, bias1, g1, be1,
                      heads=HEADS, out_ch=HIDDEN, tile_m=tile_m)
    h2 = _gatv2_layer(h1, adj, wlr2, blr2, att2, bias2, g2, be2,
                      heads=1, out_ch=HIDDEN, tile_m=tile_m)

    vmem = pl.BlockSpec(memory_space=pltpu.MemorySpace.VMEM)
    out = pl.pallas_call(
        functools.partial(_pool_lin_kernel, num_graphs=num_graphs),
        out_shape=jax.ShapeDtypeStruct((num_graphs, 1), jnp.float32),
        in_specs=[vmem] * 6,
        out_specs=vmem,
    )(h2, pool, pool_t, inv_cnt, wlin, blin)
    return out.reshape(-1)   # matches x.view(-1)


# ---------------- synthetic parameters ---------------------------------------------
def init_params(key):
    """Deterministic synthetic parameters with the same shapes as the PyTorch module."""
    ks = jax.random.split(key, 16)
    s = 0.1
    f, hd, he = INPUT_DIM, HIDDEN, HEADS
    params = (
        # conv1 (GATv2Conv(input_dim, hidden, heads=4))
        jax.random.normal(ks[0], (f, he * hd), jnp.float32) * s,      # wl1
        jax.random.normal(ks[1], (1, he * hd), jnp.float32) * s,      # bl1
        jax.random.normal(ks[2], (f, he * hd), jnp.float32) * s,      # wr1
        jax.random.normal(ks[3], (1, he * hd), jnp.float32) * s,      # br1
        jax.random.normal(ks[4], (he, hd), jnp.float32) * s,          # att1
        jax.random.normal(ks[5], (1, he * hd), jnp.float32) * s,      # bias1
        # norm1 (LayerNorm(hidden*heads))
        jnp.ones((1, he * hd), jnp.float32),                          # gamma1
        jnp.zeros((1, he * hd), jnp.float32),                         # beta1
        # conv2 (GATv2Conv(hidden*heads, hidden, heads=1))
        jax.random.normal(ks[6], (he * hd, hd), jnp.float32) * s,     # wl2
        jax.random.normal(ks[7], (1, hd), jnp.float32) * s,           # bl2
        jax.random.normal(ks[8], (he * hd, hd), jnp.float32) * s,     # wr2
        jax.random.normal(ks[9], (1, hd), jnp.float32) * s,           # br2
        jax.random.normal(ks[10], (1, hd), jnp.float32) * s,          # att2
        jax.random.normal(ks[11], (1, hd), jnp.float32) * s,          # bias2
        # norm2 (LayerNorm(hidden))
        jnp.ones((1, hd), jnp.float32),                               # gamma2
        jnp.zeros((1, hd), jnp.float32),                              # beta2
        # lin (Linear(hidden*2, 1))
        jax.random.normal(ks[12], (2 * hd, 1), jnp.float32) * s,      # wlin
        jax.random.normal(ks[13], (1, 1), jnp.float32) * s,           # blin
    )
    return params


if __name__ == "__main__":
    key = jax.random.PRNGKey(0)
    k_x, k_p = jax.random.split(key)

    NODES_PER_GRAPH = 12
    B = 2
    N = B * NODES_PER_GRAPH          # 24 nodes -> padded to 32, grid of 2 row tiles
    x = jax.random.normal(k_x, (N, INPUT_DIM), jnp.float32)
    batch = jnp.concatenate([jnp.full((NODES_PER_GRAPH,), b, jnp.int32) for b in range(B)])

    # deterministic ring edges within each graph (both directions)
    idx = jnp.arange(N, dtype=jnp.int32)
    nxt = (idx + 1) % NODES_PER_GRAPH + (idx // NODES_PER_GRAPH) * NODES_PER_GRAPH
    src = jnp.concatenate([idx, nxt])
    dst = jnp.concatenate([nxt, idx])
    edge_index = jnp.stack([src, dst], axis=0)     # [2, E], row0=src, row1=dst

    params = init_params(k_p)
    out = gat_classifier_forward(x, edge_index, batch, params, num_graphs=B, tile_m=16)
    out = jax.block_until_ready(out)
    assert out.shape == (B,) and bool(jnp.all(jnp.isfinite(out)))
    print("KERNEL_OK")
</pallas_src>

<mosaic_0001>
module attributes {stable_mosaic.version = 11 : i64} {
  func.func @_proj_kernel(%arg0: i32, %arg1: memref<16x8xf32, #tpu.memory_space<vmem>>, %arg2: memref<8x256xf32, #tpu.memory_space<vmem>>, %arg3: memref<1x256xf32, #tpu.memory_space<vmem>>, %arg4: memref<16x256xf32, #tpu.memory_space<vmem>>) attributes {dimension_semantics = [#tpu.dimension_semantics<parallel>], iteration_bounds = array<i64: 2>, scalar_prefetch = 0 : i64, scratch_operands = 0 : i64, tpu.core_type = #tpu.core_type<tc>, window_params = [{transform_indices = @transform_0, window_bounds = array<i64: 16, 8>}, {pipeline_mode = #tpu.pipeline_mode<synchronous>, transform_indices = @transform_1, window_bounds = array<i64: 8, 256>}, {pipeline_mode = #tpu.pipeline_mode<synchronous>, transform_indices = @transform_2, window_bounds = array<i64: 1, 256>}, {transform_indices = @transform_3, window_bounds = array<i64: 16, 256>}]} {
    %c0 = arith.constant 0 : index
    %c0_0 = arith.constant 0 : index
    %0 = vector.load %arg1[%c0, %c0_0] : memref<16x8xf32, #tpu.memory_space<vmem>>, vector<16x8xf32>
    %c0_1 = arith.constant 0 : index
    %c0_2 = arith.constant 0 : index
    %1 = vector.load %arg2[%c0_1, %c0_2] : memref<8x256xf32, #tpu.memory_space<vmem>>, vector<8x256xf32>
    %cst = arith.constant dense<0.000000e+00> : vector<16x256xf32>
    %2 = tpu.matmul %0, %1, %cst {dimension_numbers = #tpu.dot_dimension_numbers<[1], [0], [0], [1], [0, 0, 1, 1], [], []>} : vector<16x8xf32>, vector<8x256xf32>, vector<16x256xf32> -> vector<16x256xf32>
    %c0_3 = arith.constant 0 : index
    %c0_4 = arith.constant 0 : index
    %3 = vector.load %arg3[%c0_3, %c0_4] : memref<1x256xf32, #tpu.memory_space<vmem>>, vector<1x256xf32>
    %4 = vector.broadcast %3 : vector<1x256xf32> to vector<16x256xf32>
    %5 = arith.addf %2, %4 : vector<16x256xf32>
    %c0_5 = arith.constant 0 : index
    %c0_6 = arith.constant 0 : index
    %6 = vector.load %arg4[%c0_5, %c0_6] : memref<16x256xf32, #tpu.memory_space<vmem>>, vector<16x256xf32>
    tpu.vector_store %arg4[%c0_5, %c0_6], %5 {strides = array<i32>} : memref<16x256xf32, #tpu.memory_space<vmem>>, vector<16x256xf32>,
    return
  }
  func.func @transform_0(%arg0: i32) -> (i32, i32) {
    %c0_i32 = arith.constant 0 : i32
    %c0_i32_0 = arith.constant 0 : i32
    return %arg0, %c0_i32 : i32, i32
  }
  func.func @transform_1(%arg0: i32) -> (i32, i32) {
    %c0_i32 = arith.constant 0 : i32
    %c0_i32_0 = arith.constant 0 : i32
    %c0_i32_1 = arith.constant 0 : i32
    return %c0_i32, %c0_i32_0 : i32, i32
  }
  func.func @transform_2(%arg0: i32) -> (i32, i32) {
    %c0_i32 = arith.constant 0 : i32
    %c0_i32_0 = arith.constant 0 : i32
    %c0_i32_1 = arith.constant 0 : i32
    return %c0_i32, %c0_i32_0 : i32, i32
  }
  func.func @transform_3(%arg0: i32) -> (i32, i32) {
    %c0_i32 = arith.constant 0 : i32
    %c0_i32_0 = arith.constant 0 : i32
    return %arg0, %c0_i32 : i32, i32
  }
}

</mosaic_0001>

<llo_original>
// kernel: tpu_custom_call.1
$region0: #{tpu_custom_call.1}
  #allocation0 [shape = 'u32[]', space=smem, size = 0x4, offset = 0x4, fixed_abs, tag = 'smem constant byte address 0x4 - core index']
  #allocation1 [shape = 'u32[72,128]{1,0:T(1,128)}', space=vmem, size = 0x9000, scoped, tag = 'internal scratch']
  %s0 = inlined_call_operand.vmem [shape: f32[32,8], index: 0, kind: input, shape index: {}]
  %s1 = inlined_call_operand.vmem [shape: f32[8,256], index: 1, kind: input, shape index: {}]
  %s2 = inlined_call_operand.vmem [shape: f32[1,256], index: 2, kind: input, shape index: {}]
  %s3 = inlined_call_operand.hbm [shape: f32[32,256], index: 3, kind: output, shape index: {}]
  %s4 = sld [smem:[#allocation0]]
  $region45: #{tpu_custom_call.1} parent=0
    _
  %s6 = ssub.s32 1, %s4
  %s7 = scalar_select 0, %s6, %s4
  $region1: #{tpu_custom_call.1} parent=0
    #allocation2 [shape = 'u8[32768]{0}', space=vmem, size = 0x8000, scoped, tag = 'output window, operand 0']
    #allocation3 [shape = 's32[2]{0}', space=sflag, size = 0x8, scoped, tag = 'scoped memory for tpu_custom_call.1']
    %8 = vsyncpa [#allocation3], 0
    %s9 = scalar_lea.sflag [#allocation3], 1
    %10 = vsyncpa %s9, 0
    loop: start=0, step=1, limit=4
    $region2: #{tpu_custom_call.1} parent=1 // loop_pre_header
      _
    $region3: #{tpu_custom_call.1} parent=1 // loop_header
      %s12 = sphi 0, %s16
      %p13 = scmp.ge.s32.totalorder %s12, 4
      %s22 = sphi 0, %s24
      %s25 = sphi 0, %s22
      %s26 = sphi 0, %s25
      %s42 = sphi 0, %s26
      %s46 = sphi 0, %s46
      %s48 = sphi 0, %s46
      %s49 = sphi 0, %s48
      %s63 = sphi 0, %s49
      %s67 = sphi 0, %s67
      %s69 = sphi 0, %s67
      %s70 = sphi 0, %s69
      %s84 = sphi 0, %s70
      %s90 = sphi 0, %s92
      %s93 = sphi 0, %s90
      %s94 = sphi 0, %s93
      %s110 = sphi 0, %s94
    $region4: #{tpu_custom_call.1} parent=1 // loop_header_branch
      %15 = sbr.rel (%p13) target = $region8
    $region5: #{tpu_custom_call.1} parent=1 // loop_body
      %s17 = ssub.s32 %s12, 1
      %s18 = ssub.s32 %s12, 2
      %s19 = sadd.s32 %s12, 1
      %s20 = ssub.s32 %s12, %s19
      %p21 = scmp.eq.s32.totalorder %s20, 0
      %s23 = sadd.s32 %s22, 1
      %s24 = scalar_select %p21, %s22, %s23
      %p27 = pneg %p21
      %p28 = scmp.eq.s32.totalorder %s12, 1
      %p29 = por %p27, %p28
      %p30 = scmp.ne.s32.totalorder %s22, %s25
      %p31 = scmp.eq.s32.totalorder %s12, 0
      %p32 = por %p30, %p31
      %p33 = scmp.ne.s32.totalorder %s22, %s25
      %p34 = scmp.eq.s32.totalorder %s17, 1
      %p35 = por %p33, %p34
      %p36 = scmp.ne.s32.totalorder %s25, %s26
      %p37 = scmp.eq.s32.totalorder %s17, 0
      %p38 = por %p36, %p37
      %p39 = scmp.ne.s32.totalorder %s25, %s26
      %p40 = scmp.eq.s32.totalorder %s18, 1
      %p41 = por %p39, %p40
      %p43 = scmp.ne.s32.totalorder %s26, %s42
      %p44 = scmp.eq.s32.totalorder %s18, 0
      %p45 = por %p43, %p44
      %s47 = sadd.s32 %s46, 1
      %p50 = scmp.eq.s32.totalorder %s12, 1
      %p51 = scmp.ne.s32.totalorder %s46, %s48
      %p52 = scmp.eq.s32.totalorder %s12, 0
      %p53 = por %p51, %p52
      %p54 = scmp.ne.s32.totalorder %s46, %s48
      %p55 = scmp.eq.s32.totalorder %s17, 1
      %p56 = por %p54, %p55
      %p57 = scmp.ne.s32.totalorder %s48, %s49
      %p58 = scmp.eq.s32.totalorder %s17, 0
      %p59 = por %p57, %p58
      %p60 = scmp.ne.s32.totalorder %s48, %s49
      %p61 = scmp.eq.s32.totalorder %s18, 1
      %p62 = por %p60, %p61
      %p64 = scmp.ne.s32.totalorder %s49, %s63
      %p65 = scmp.eq.s32.totalorder %s18, 0
      %p66 = por %p64, %p65
      %s68 = sadd.s32 %s67, 1
      %p71 = scmp.eq.s32.totalorder %s12, 1
      %p72 = scmp.ne.s32.totalorder %s67, %s69
      %p73 = scmp.eq.s32.totalorder %s12, 0
      %p74 = por %p72, %p73
      %p75 = scmp.ne.s32.totalorder %s67, %s69
      %p76 = scmp.eq.s32.totalorder %s17, 1
      %p77 = por %p75, %p76
      %p78 = scmp.ne.s32.totalorder %s69, %s70
      %p79 = scmp.eq.s32.totalorder %s17, 0
      %p80 = por %p78, %p79
      %p81 = scmp.ne.s32.totalorder %s69, %s70
      %p82 = scmp.eq.s32.totalorder %s18, 1
      %p83 = por %p81, %p82
      %p85 = scmp.ne.s32.totalorder %s70, %s84
      %p86 = scmp.eq.s32.totalorder %s18, 0
      %p87 = por %p85, %p86
      %s88 = ssub.s32 %s12, %s19
      %p89 = scmp.eq.s32.totalorder %s88, 0
      %s91 = sadd.s32 %s90, 1
      %s92 = scalar_select %p89, %s90, %s91
      %p95 = pneg %p89
      %p96 = scmp.eq.s32.totalorder %s12, 1
      %p97 = por %p95, %p96
      %p98 = scmp.ne.s32.totalorder %s90, %s93
      %p99 = scmp.eq.s32.totalorder %s12, 0
      %p100 = por %p98, %p99
      %p101 = scmp.ne.s32.totalorder %s90, %s93
      %p102 = scmp.eq.s32.totalorder %s17, 1
      %p103 = por %p101, %p102
      %p104 = scmp.ne.s32.totalorder %s93, %s94
      %p105 = scmp.eq.s32.totalorder %s17, 0
      %p106 = por %p104, %p105
      %p107 = scmp.ne.s32.totalorder %s93, %s94
      %p108 = scmp.eq.s32.totalorder %s18, 1
      %p109 = por %p107, %p108
      %p111 = scmp.ne.s32.totalorder %s94, %s110
      %p112 = scmp.eq.s32.totalorder %s18, 0
      %p113 = por %p111, %p112
      %p114 = scmp.le.s32.totalorder 1, %s12
      %p115 = scmp.lt.s32.totalorder %s12, 3
      %p116 = pnand %p114, %p115
      %p117 = pneg %p116
      // Predicated region
      $region9: #{tpu_custom_call.1} parent=5 // pred_check
        _
      $region10: #{tpu_custom_call.1} parent=5 // pred_check_branch
        %119 = sbr.rel (%p116) target = $region12
      $region11: #{tpu_custom_call.1} parent=5 // pred_region
        %s120 = ssub.s32 %s12, 1
        // Predicated region
        $region13: #{tpu_custom_call.1} parent=11 // pred_check
          %p121 = pneg %p59
        $region14: #{tpu_custom_call.1} parent=11 // pred_check_branch
          %123 = sbr.rel (%p121) target = $region16
        $region15: #{tpu_custom_call.1} parent=11 // pred_region
          _
        $region16: #{tpu_custom_call.1} parent=11 // pred_fallthru
          _
        // Predicated region
        $region17: #{tpu_custom_call.1} parent=11 // pred_check
          %p124 = pneg %p80
        $region18: #{tpu_custom_call.1} parent=11 // pred_check_branch
          %126 = sbr.rel (%p124) target = $region20
        $region19: #{tpu_custom_call.1} parent=11 // pred_region
          _
        $region20: #{tpu_custom_call.1} parent=11 // pred_fallthru
          _
      $region12: #{tpu_custom_call.1} parent=5 // pred_fallthru
        _
      %p127 = scmp.lt.s32.totalorder %s12, 2
      // Predicated region
      $region21: #{tpu_custom_call.1} parent=5 // pred_check
        %p128 = pneg %p127
      $region22: #{tpu_custom_call.1} parent=5 // pred_check_branch
        %130 = sbr.rel (%p128) target = $region24
      $region23: #{tpu_custom_call.1} parent=5 // pred_region
        // Predicated region
        $region25: #{tpu_custom_call.1} parent=23 // pred_check
          %p131 = pneg %p32
        $region26: #{tpu_custom_call.1} parent=23 // pred_check_branch
          %133 = sbr.rel (%p131) target = $region28
        $region27: #{tpu_custom_call.1} parent=23 // pred_region
          %s134 = smul.u32 2, %s12
          %p135 = scmp.lt.s32.totalorder %s134, 3
          %s136 = scalar_select %p135, %s134, 3
          %s137 = smul.addr %s136, 8
          %s138 = scalar_lea.vmem %s0, %s137
          %s139 = smul.u32 2, %s12
        $region28: #{tpu_custom_call.1} parent=23 // pred_fallthru
          _
      $region24: #{tpu_custom_call.1} parent=5 // pred_fallthru
        _
      %p140 = scmp.le.s32.totalorder 1, %s12
      %p141 = scmp.lt.s32.totalorder %s12, 3
      %p142 = pnand %p140, %p141
      %p143 = pneg %p142
      // Predicated region
      $region29: #{tpu_custom_call.1} parent=5 // pred_check
        _
      $region30: #{tpu_custom_call.1} parent=5 // pred_check_branch
        %145 = sbr.rel (%p142) target = $region32
      $region31: #{tpu_custom_call.1} parent=5 // pred_region
        %s146 = ssub.s32 %s12, 1
        %s147 = smul.u32 2, %s17
        %p148 = scmp.lt.s32.totalorder %s147, 3
        %s149 = scalar_select %p148, %s147, 3
        %s150 = smul.addr %s149, 8
        %s151 = scalar_lea.vmem %s0, %s150
        %p152 = pneg %p38
        %p153 = pneg %p35
        %p154 = pneg %p59
        %p155 = pneg %p56
        %p156 = pneg %p80
        %p157 = pneg %p77
        %p158 = pneg %p106
        %p159 = pneg %p103
        %s160 = sand.u32 %s93, 1
        %s161 = scalar_lea.sflag [#allocation3], %s160
        %s162 = sand.u32 %s93, 1
        %s163 = smul.addr %s162, 32
        %s164 = scalar_lea.vmem [#allocation2], %s163
        %s165 = smul.u32 2, %s17
        %p166 = scmp.lt.s32.totalorder %s165, 3
        %s167 = scalar_select %p166, %s165, 3
        %s168 = smul.addr %s167, 8
        %s169 = scalar_lea.vmem %s0, %s168
        %s170 = smul.u32 2, %s17
        %s171 = smul.u32 2, %s17
        %v172 = vld [vmem:[%s169] sm:$0xff]
        %v173 = vld [vmem:[%s169 + $0x8] sm:$0xff]
        %v174 = vld [vmem:[%s1] sm:$0xff]
        %v175 = vld [vmem:[%s1 + $0x8] sm:$0xff]
        %v176 = vld [vmem:[%s2] sm:$0x3]
        %v178 = vperm.slane %v176, 0
        %v179 = vperm.slane %v176, 1
        %vm182 = vcmask 64512
        %v184 = vsel %vm182, %v172, 0
        %v187 = vsel %vm182, %v173, 0
        %189 = vmatpush.msra.mxu0 0.0
        %190 = vmatpush.msra.mxu0 0.0
        %191 = vmatpush.msra.mxu0 0.0
        %192 = vmatpush.msra.mxu0 0.0
        %193 = vmatpush.msra.mxu0 0.0
        %194 = vmatpush.msra.mxu0 0.0
        %195 = vmatpush.msra.mxu0 0.0
        %196 = vmatpush.msra.mxu0 0.0
        %197 = vmatpush.msra.mxu0 0.0
        %198 = vmatpush.msra.mxu0 0.0
        %199 = vmatpush.msra.mxu0 0.0
        %200 = vmatpush.msra.mxu0 0.0
        %201 = vmatpush.msra.mxu0 0.0
        %202 = vmatpush.msra.mxu0 0.0
        %203 = vmatpush.msra.mxu0 0.0
        %204 = vmatpush.msra.mxu0 %v174
        %205 = vmatmul.f32.gmra.mxu0 %v184
        %v206 = vpop.f32.mrf.mxu0
        %v207 = vadd.f32 %v178, %v206
        %208 = vmatmul.f32.gmra.mxu0 %v187
        %v209 = vpop.f32.mrf.mxu0
        %v210 = vadd.f32 %v178, %v209
        %211 = vdwg.mxu0
        %212 = vmatpush.msra.mxu0 0.0
        %213 = vmatpush.msra.mxu0 0.0
        %214 = vmatpush.msra.mxu0 0.0
        %215 = vmatpush.msra.mxu0 0.0
        %216 = vmatpush.msra.mxu0 0.0
        %217 = vmatpush.msra.mxu0 0.0
        %218 = vmatpush.msra.mxu0 0.0
        %219 = vmatpush.msra.mxu0 0.0
        %220 = vmatpush.msra.mxu0 0.0
        %221 = vmatpush.msra.mxu0 0.0
        %222 = vmatpush.msra.mxu0 0.0
        %223 = vmatpush.msra.mxu0 0.0
        %224 = vmatpush.msra.mxu0 0.0
        %225 = vmatpush.msra.mxu0 0.0
        %226 = vmatpush.msra.mxu0 0.0
        %227 = vmatpush.msra.mxu0 %v175
        %228 = vmatmul.f32.gmra.mxu0 %v184
        %v229 = vpop.f32.mrf.mxu0
        %v230 = vadd.f32 %v179, %v229
        %231 = vmatmul.f32.gmra.mxu0 %v187
        %v232 = vpop.f32.mrf.mxu0
        %v233 = vadd.f32 %v179, %v232
        %234 = vdwg.mxu0
        %235 = vst [vmem:[%s164] sm:$0xff] %v207
        %236 = vst [vmem:[%s164 + $0x8] sm:$0xff] %v230
        %237 = vst [vmem:[%s164 + $0x10] sm:$0xff] %v210
        %238 = vst [vmem:[%s164 + $0x18] sm:$0xff] %v233
        %s239 = sand.u32 %s93, 1
        %s240 = scalar_lea.sflag [#allocation3], %s239
        %s241 = sand.u32 %s93, 1
        %s242 = smul.addr %s241, 32
        %s243 = scalar_lea.vmem [#allocation2], %s242
        // Predicated region
        $region33: #{tpu_custom_call.1} parent=31 // pred_check
          %p244 = pneg %p103
        $region34: #{tpu_custom_call.1} parent=31 // pred_check_branch
          %246 = sbr.rel (%p244) target = $region36
        $region35: #{tpu_custom_call.1} parent=31 // pred_region
          %s247 = smul.u32 2, %s17
          %249 = vsyncadd %s240, 0
          %s250 = smul.addr %s247, 2
          %s251 = smul.addr %s250, 8
          %s252 = scalar_lea.hbm %s3, %s251
          %s253 = sshll.u32 %s243, 4
          %s254 = int_to_ptr.vmem [resolvable:$true] %s253
          %s255 = sshll.u32 %s252, 4
          %s256 = int_to_ptr.hbm [resolvable:$true] %s255
          %261 = dma.vmem_to_hbm [thread:$0]  %s254, 512, %s256, %s240, 256, 256, 16
        $region36: #{tpu_custom_call.1} parent=31 // pred_fallthru
          _
      $region32: #{tpu_custom_call.1} parent=5 // pred_fallthru
        _
      %p262 = scmp.le.s32.totalorder 2, %s12
      // Predicated region
      $region37: #{tpu_custom_call.1} parent=5 // pred_check
        %p263 = pneg %p262
      $region38: #{tpu_custom_call.1} parent=5 // pred_check_branch
        %265 = sbr.rel (%p263) target = $region40
      $region39: #{tpu_custom_call.1} parent=5 // pred_region
        %s266 = ssub.s32 %s12, 2
        // Predicated region
        $region41: #{tpu_custom_call.1} parent=39 // pred_check
          %p267 = pneg %p109
        $region42: #{tpu_custom_call.1} parent=39 // pred_check_branch
          %269 = sbr.rel (%p267) target = $region44
        $region43: #{tpu_custom_call.1} parent=39 // pred_region
          %s270 = sand.u32 %s94, 1
          %s271 = scalar_lea.sflag [#allocation3], %s270
          %s272 = sand.u32 %s94, 1
          %s273 = smul.addr %s272, 32
          %s274 = scalar_lea.vmem [#allocation2], %s273
          %276 = dma.done %s271, 512
        $region44: #{tpu_custom_call.1} parent=39 // pred_fallthru
          _
      $region40: #{tpu_custom_call.1} parent=5 // pred_fallthru
        _
    $region6: #{tpu_custom_call.1} parent=1 // loop_footer
      %s16 = sadd.s32 1, %s12
    $region7: #{tpu_custom_call.1} parent=1 // loop_footer_branch
      %11 = sbr.rel target = $region3
    $region8: #{tpu_custom_call.1} parent=1 // loop_exit
      _
    %277 = vsyncpa [#allocation3], 1
    %s278 = scalar_lea.sflag [#allocation3], 1
    %279 = vsyncpa %s278, 1

</llo_original>
